<compile_context>
chip_gen: v6e
topology: v6e:2x2x1
jax: 0.10.0
libtpu: 0.0.40
codegen_flags: <defaults>
</compile_context>

<pallas_src>
import functools

import jax
import jax.numpy as jnp
from jax.experimental import pallas as pl
from jax.experimental.pallas import tpu as pltpu


def _gelu_openai(x):
    # 0.5 * x * (1 + tanh(sqrt(2/pi) * x * (1 + 0.044715 * x^2))) -- all in f32.
    return 0.5 * x * (1.0 + jnp.tanh(0.7978845608028654 * x * (1.0 + 0.044715 * x * x)))


def _cdiv(a, b):
    return (a + b - 1) // b


def _round_up(x, m):
    return ((x + m - 1) // m) * m


def _pick_tn(inner, tn_target):
    """Largest multiple of 128 that divides `inner` and is <= tn_target (else full)."""
    if inner <= tn_target:
        return inner
    t = (tn_target // 128) * 128
    while t >= 128:
        if inner % t == 0:
            return t
        t -= 128
    return inner  # fall back to a single full-extent block


def _vmem_estimate(tm, tn, hidden, itemsize):
    """Working-set estimate including the default double-buffering of every block."""
    x_bytes = 2 * tm * hidden * itemsize        # x row tile (nb-invariant, still 2 bufs)
    out_bytes = 2 * tm * hidden * itemsize      # output tile (nb-invariant, still 2 bufs)
    acc_bytes = tm * hidden * 4                 # f32 accumulator scratch
    w1_bytes = 2 * hidden * tn * itemsize       # W1 block, double-buffered
    w2_bytes = 2 * tn * hidden * itemsize       # W2 block, double-buffered
    bias_bytes = 2 * (tn + hidden) * itemsize * 2
    return x_bytes + out_bytes + acc_bytes + w1_bytes + w2_bytes + bias_bytes


def _auto_config():
    """Pick (tm, tn, vmem_limit_bytes, two_core) from the local TPU generation."""
    try:
        kind = jax.devices()[0].device_kind.lower().replace(" ", "").replace("-", "")
    except Exception:  # pragma: no cover
        kind = ""
    mib = 1024 * 1024
    if "v5lite" in kind or "v5e" in kind:
        # v5e: already near the roofline knee at tm=256, but default scoped VMEM is 16 MiB.
        return dict(tm=256, tn=512, vmem_limit_bytes=96 * mib, two_core=False)
    if "v6" in kind:
        # v6e: 128 MiB VMEM, needs large tm to flip from HBM-bound to MXU-bound.
        return dict(tm=768, tn=1024, vmem_limit_bytes=100 * mib, two_core=False)
    if "7" in kind:
        # v7x: 64 MiB VMEM per TC, lower roofline knee, 2 TensorCores per chip.
        return dict(tm=512, tn=256, vmem_limit_bytes=48 * mib, two_core=True)
    # Unknown / older generations: conservative tiles, generous scoped VMEM.
    return dict(tm=256, tn=256, vmem_limit_bytes=64 * mib, two_core=False)


def glu_kernel(x_ref, w1_ref, b1_ref, w2_ref, b2_ref, o_ref, acc_ref):
    # x_ref:  (tm, H)       row tile of flattened hidden_states (constant along nb)
    # w1_ref: (1, H, tn)    contiguous pre-tiled dense_h_to_4h block for this nb
    # b1_ref: (1, tn)       dense_h_to_4h bias block for this nb
    # w2_ref: (tn, H)       dense_4h_to_h weight row-block for this nb
    # b2_ref: (1, H)        dense_4h_to_h bias (constant)
    # o_ref:  (tm, H)       output row tile (written only at the last nb)
    # acc_ref:(tm, H)       f32 accumulator scratch, resident across nb
    nb = pl.program_id(1)

    @pl.when(nb == 0)
    def _():
        acc_ref[...] = jnp.zeros_like(acc_ref)

    # First matmul on the MXU, f32 accumulation; bias + GELU in f32 on the
    # small (tm, tn) tile only (no full (tm, 4H) intermediate is materialized).
    h = jnp.dot(x_ref[...], w1_ref[0], preferred_element_type=jnp.float32)
    h = h + b1_ref[...].astype(jnp.float32)
    g = _gelu_openai(h)

    # Second matmul: partial contraction over this 4H block, accumulate in f32.
    acc_ref[...] += jnp.dot(g.astype(w2_ref.dtype), w2_ref[...],
                            preferred_element_type=jnp.float32)

    @pl.when(nb == pl.num_programs(1) - 1)
    def _():
        # b2 added exactly once, at writeback.
        o_ref[...] = (acc_ref[...] + b2_ref[...].astype(jnp.float32)).astype(o_ref.dtype)


@functools.partial(jax.jit,
                   static_argnames=("tm", "tn", "vmem_limit_bytes", "two_core"))
def _glu_forward_impl(hidden_states, w1, b1, w2, b2, *,
                      tm, tn, vmem_limit_bytes, two_core):
    S, B, H = hidden_states.shape
    H_w, I = w1.shape
    assert H_w == H and w2.shape == (I, H) and b1.shape == (I,) and b2.shape == (H,)

    dtype = hidden_states.dtype
    itemsize = jnp.dtype(dtype).itemsize
    sublane = {4: 8, 2: 16, 1: 32}[itemsize]   # sublane packing multiple per dtype

    M = S * B

    # ---- 4H tile: auto-pick a lane-aligned divisor of I (no hard assert). ----
    tn_eff = _pick_tn(I, tn)

    # ---- Row tile: balance across row tiles to minimize padding; on v7x make
    #      the "parallel" row axis even so both TensorCores are occupied. ----
    n_row_tiles = max(1, _cdiv(M, tm))
    if two_core and (n_row_tiles % 2 == 1) and M >= 2 * sublane:
        n_row_tiles += 1
    tm_eff = _round_up(_cdiv(M, n_row_tiles), sublane)

    # ---- VMEM guard: shrink tn (then tm) until the double-buffered working set
    #      (x, out, W1, W2 x2 buffers + f32 acc) fits under the scoped limit. ----
    budget = vmem_limit_bytes - 2 * 1024 * 1024
    while _vmem_estimate(tm_eff, tn_eff, H, itemsize) > budget:
        new_tn = _pick_tn(I, max(128, tn_eff // 2))
        if new_tn < tn_eff:
            tn_eff = new_tn
            continue
        if tm_eff > sublane:
            tm_eff = max(sublane, _round_up(tm_eff // 2, sublane))
            continue
        break  # smallest config; let the compiler decide

    n_row_tiles = _cdiv(M, tm_eff)
    M_pad = n_row_tiles * tm_eff
    nb_steps = I // tn_eff

    x2d = hidden_states.reshape(M, H)
    if M_pad != M:
        x2d = jnp.pad(x2d, ((0, M_pad - M), (0, 0)))

    # Pre-tile W1 to [I/tn, H, tn] so each per-nb weight block is a fully
    # contiguous DMA.  In production, hoist this to weight-prep time.
    w1_tiled = w1.reshape(H, nb_steps, tn_eff).transpose(1, 0, 2)

    b1_2d = b1.reshape(1, I)
    b2_2d = b2.reshape(1, H)

    grid = (n_row_tiles, nb_steps)

    out2d = pl.pallas_call(
        glu_kernel,
        out_shape=jax.ShapeDtypeStruct((M_pad, H), dtype),
        grid_spec=pltpu.PrefetchScalarGridSpec(
            num_scalar_prefetch=0,
            grid=grid,
            in_specs=[
                pl.BlockSpec((tm_eff, H), lambda i, nb: (i, 0)),        # x row tile
                pl.BlockSpec((1, H, tn_eff), lambda i, nb: (nb, 0, 0)),  # W1 block (contig)
                pl.BlockSpec((1, tn_eff), lambda i, nb: (0, nb)),        # b1 block
                pl.BlockSpec((tn_eff, H), lambda i, nb: (nb, 0)),        # W2 row-block
                pl.BlockSpec((1, H), lambda i, nb: (0, 0)),              # b2 (constant)
            ],
            out_specs=pl.BlockSpec((tm_eff, H), lambda i, nb: (i, 0)),
            scratch_shapes=[pltpu.VMEM((tm_eff, H), jnp.float32)],
        ),
        compiler_params=pltpu.CompilerParams(
            # rows parallel (megacore-shardable), 4H axis is the reduction.
            dimension_semantics=("parallel", "arbitrary"),
            vmem_limit_bytes=vmem_limit_bytes),
    )(x2d, w1_tiled, b1_2d, w2, b2_2d)

    if M_pad != M:
        out2d = out2d[:M]
    return out2d.reshape(S, B, H)


def glu_forward(hidden_states, w1, b1, w2, b2, *,
                tm=None, tn=None, vmem_limit_bytes=None):
    """hidden_states: [seq_len, batch, hidden] -> [seq_len, batch, hidden].

    w1: [H, I]  (transpose of torch dense_h_to_4h.weight),  b1: [I]
    w2: [I, H]  (transpose of torch dense_4h_to_h.weight),  b2: [H]
    Tile sizes / scoped-VMEM limit default to a per-TPU-generation config.
    """
    cfg = _auto_config()
    tm = cfg["tm"] if tm is None else tm
    tn = cfg["tn"] if tn is None else tn
    vmem_limit_bytes = (cfg["vmem_limit_bytes"]
                        if vmem_limit_bytes is None else vmem_limit_bytes)
    return _glu_forward_impl(hidden_states, w1, b1, w2, b2,
                             tm=int(tm), tn=int(tn),
                             vmem_limit_bytes=int(vmem_limit_bytes),
                             two_core=bool(cfg["two_core"]))


def glu_reference(hidden_states, w1, b1, w2, b2):
    x = hidden_states.astype(jnp.float32)
    h = jnp.einsum("sbh,hi->sbi", x, w1.astype(jnp.float32)) + b1.astype(jnp.float32)
    g = _gelu_openai(h)
    return jnp.einsum("sbi,ih->sbh", g, w2.astype(jnp.float32)) + b2.astype(jnp.float32)


if __name__ == "__main__":
    key = jax.random.PRNGKey(0)
    seq_len, batch, hidden = 8, 2, 128       # H multiple of 128 -> lane-dense stores
    inner = 4 * hidden                        # 512

    kx, kw1, kb1, kw2, kb2 = jax.random.split(key, 5)
    x = jax.random.normal(kx, (seq_len, batch, hidden), dtype=jnp.float32)
    # Weights stored as [in, out] (transpose of torch.nn.Linear.weight).
    w1 = jax.random.normal(kw1, (hidden, inner), dtype=jnp.float32) * 0.02
    b1 = jax.random.normal(kb1, (inner,), dtype=jnp.float32) * 0.02
    w2 = jax.random.normal(kw2, (inner, hidden), dtype=jnp.float32) * 0.02
    b2 = jax.random.normal(kb2, (hidden,), dtype=jnp.float32) * 0.02

    ref = glu_reference(x, w1, b1, w2, b2)

    # Auto per-generation config (single or multi nb step depending on chip).
    out_auto = glu_forward(x, w1, b1, w2, b2)
    out_auto = jax.block_until_ready(out_auto)
    assert out_auto.shape == (seq_len, batch, hidden)
    assert jnp.allclose(out_auto, ref, atol=1e-5, rtol=1e-5), "auto-config f32 mismatch"

    # Explicit small tiles so the 4H reduction runs 2 accumulation steps.
    out = glu_forward(x, w1, b1, w2, b2, tm=256, tn=256)
    out = jax.block_until_ready(out)
    assert jnp.allclose(out, ref, atol=1e-5, rtol=1e-5), "f32 mismatch vs reference"

    # bf16 operands + f32 accumulation (recommended production config).
    out_bf16 = glu_forward(x.astype(jnp.bfloat16),
                           w1.astype(jnp.bfloat16), b1.astype(jnp.bfloat16),
                           w2.astype(jnp.bfloat16), b2.astype(jnp.bfloat16),
                           tm=256, tn=256)
    out_bf16 = jax.block_until_ready(out_bf16)
    assert jnp.allclose(out_bf16.astype(jnp.float32), ref, atol=3e-2, rtol=3e-2), \
        "bf16 mismatch vs reference"

    print("KERNEL_OK")
</pallas_src>

<mosaic_0001>
module attributes {stable_mosaic.version = 11 : i64} {
  func.func @glu_kernel(%arg0: i32, %arg1: i32, %arg2: memref<16x128xf32, #tpu.memory_space<vmem>>, %arg3: memref<1x128x256xf32, #tpu.memory_space<vmem>>, %arg4: memref<1x256xf32, #tpu.memory_space<vmem>>, %arg5: memref<256x128xf32, #tpu.memory_space<vmem>>, %arg6: memref<1x128xf32, #tpu.memory_space<vmem>>, %arg7: memref<16x128xf32, #tpu.memory_space<vmem>>, %arg8: memref<16x128xf32, #tpu.memory_space<vmem>>) attributes {dimension_semantics = [#tpu.dimension_semantics<parallel>, #tpu.dimension_semantics<arbitrary>], iteration_bounds = array<i64: 1, 2>, scalar_prefetch = 0 : i64, scratch_operands = 1 : i64, tpu.core_type = #tpu.core_type<tc>, window_params = [{transform_indices = @transform_0, window_bounds = array<i64: 16, 128>}, {transform_indices = @transform_1, window_bounds = array<i64: 1, 128, 256>}, {transform_indices = @transform_2, window_bounds = array<i64: 1, 256>}, {transform_indices = @transform_3, window_bounds = array<i64: 256, 128>}, {pipeline_mode = #tpu.pipeline_mode<synchronous>, transform_indices = @transform_4, window_bounds = array<i64: 1, 128>}, {transform_indices = @transform_5, window_bounds = array<i64: 16, 128>}]} {
    %c0_i32 = arith.constant 0 : i32
    %0 = arith.cmpi eq, %arg1, %c0_i32 : i32
    %1 = arith.extui %0 : i1 to i32
    %c0_i32_0 = arith.constant 0 : i32
    %2 = arith.cmpi ne, %1, %c0_i32_0 : i32
    scf.if %2 {
      %cst_20 = arith.constant 0.000000e+00 : f32
      %32 = vector.broadcast %cst_20 : f32 to vector<16x128xf32>
      %c0_21 = arith.constant 0 : index
      %c0_22 = arith.constant 0 : index
      %33 = vector.load %arg8[%c0_21, %c0_22] : memref<16x128xf32, #tpu.memory_space<vmem>>, vector<16x128xf32>
      tpu.vector_store %arg8[%c0_21, %c0_22], %32 {strides = array<i32>} : memref<16x128xf32, #tpu.memory_space<vmem>>, vector<16x128xf32>,
    } else {
    }
    %c0 = arith.constant 0 : index
    %c0_1 = arith.constant 0 : index
    %3 = vector.load %arg2[%c0, %c0_1] : memref<16x128xf32, #tpu.memory_space<vmem>>, vector<16x128xf32>
    %c0_2 = arith.constant 0 : index
    %c0_3 = arith.constant 0 : index
    %c0_4 = arith.constant 0 : index
    %4 = vector.load %arg3[%c0_2, %c0_3, %c0_4] : memref<1x128x256xf32, #tpu.memory_space<vmem>>, vector<1x128x256xf32>
    %5 = vector.shape_cast %4 : vector<1x128x256xf32> to vector<128x256xf32>
    %cst = arith.constant dense<0.000000e+00> : vector<16x256xf32>
    %6 = tpu.matmul %3, %5, %cst {dimension_numbers = #tpu.dot_dimension_numbers<[1], [0], [0], [1], [0, 0, 1, 1], [], []>} : vector<16x128xf32>, vector<128x256xf32>, vector<16x256xf32> -> vector<16x256xf32>
    %c0_5 = arith.constant 0 : index
    %c0_6 = arith.constant 0 : index
    %7 = vector.load %arg4[%c0_5, %c0_6] : memref<1x256xf32, #tpu.memory_space<vmem>>, vector<1x256xf32>
    %8 = vector.broadcast %7 : vector<1x256xf32> to vector<16x256xf32>
    %9 = arith.addf %6, %8 : vector<16x256xf32>
    %cst_7 = arith.constant 5.000000e-01 : f32
    %10 = vector.broadcast %cst_7 : f32 to vector<16x256xf32>
    %11 = arith.mulf %10, %9 : vector<16x256xf32>
    %cst_8 = arith.constant 0.797884583 : f32
    %12 = vector.broadcast %cst_8 : f32 to vector<16x256xf32>
    %13 = arith.mulf %12, %9 : vector<16x256xf32>
    %cst_9 = arith.constant 4.471500e-02 : f32
    %14 = vector.broadcast %cst_9 : f32 to vector<16x256xf32>
    %15 = arith.mulf %14, %9 : vector<16x256xf32>
    %16 = arith.mulf %15, %9 : vector<16x256xf32>
    %cst_10 = arith.constant 1.000000e+00 : f32
    %17 = vector.broadcast %cst_10 : f32 to vector<16x256xf32>
    %18 = arith.addf %17, %16 : vector<16x256xf32>
    %19 = arith.mulf %13, %18 : vector<16x256xf32>
    %20 = math.tanh %19 : vector<16x256xf32>
    %cst_11 = arith.constant 1.000000e+00 : f32
    %21 = vector.broadcast %cst_11 : f32 to vector<16x256xf32>
    %22 = arith.addf %21, %20 : vector<16x256xf32>
    %23 = arith.mulf %11, %22 : vector<16x256xf32>
    %c0_12 = arith.constant 0 : index
    %c0_13 = arith.constant 0 : index
    %24 = vector.load %arg8[%c0_12, %c0_13] : memref<16x128xf32, #tpu.memory_space<vmem>>, vector<16x128xf32>
    %c0_14 = arith.constant 0 : index
    %c0_15 = arith.constant 0 : index
    %25 = vector.load %arg5[%c0_14, %c0_15] : memref<256x128xf32, #tpu.memory_space<vmem>>, vector<256x128xf32>
    %cst_16 = arith.constant dense<0.000000e+00> : vector<16x128xf32>
    %26 = tpu.matmul %23, %25, %cst_16 {dimension_numbers = #tpu.dot_dimension_numbers<[1], [0], [0], [1], [0, 0, 1, 1], [], []>} : vector<16x256xf32>, vector<256x128xf32>, vector<16x128xf32> -> vector<16x128xf32>
    %27 = arith.addf %24, %26 : vector<16x128xf32>
    %c0_17 = arith.constant 0 : index
    %c0_18 = arith.constant 0 : index
    %28 = vector.load %arg8[%c0_17, %c0_18] : memref<16x128xf32, #tpu.memory_space<vmem>>, vector<16x128xf32>
    tpu.vector_store %arg8[%c0_17, %c0_18], %27 {strides = array<i32>} : memref<16x128xf32, #tpu.memory_space<vmem>>, vector<16x128xf32>,
    %c1_i32 = arith.constant 1 : i32
    %29 = arith.cmpi eq, %arg1, %c1_i32 : i32
    %30 = arith.extui %29 : i1 to i32
    %c0_i32_19 = arith.constant 0 : i32
    %31 = arith.cmpi ne, %30, %c0_i32_19 : i32
    scf.if %31 {
      %c0_20 = arith.constant 0 : index
      %c0_21 = arith.constant 0 : index
      %32 = vector.load %arg8[%c0_20, %c0_21] : memref<16x128xf32, #tpu.memory_space<vmem>>, vector<16x128xf32>
      %c0_22 = arith.constant 0 : index
      %c0_23 = arith.constant 0 : index
      %33 = vector.load %arg6[%c0_22, %c0_23] : memref<1x128xf32, #tpu.memory_space<vmem>>, vector<1x128xf32>
      %34 = vector.broadcast %33 : vector<1x128xf32> to vector<16x128xf32>
      %35 = arith.addf %32, %34 : vector<16x128xf32>
      %c0_24 = arith.constant 0 : index
      %c0_25 = arith.constant 0 : index
      %36 = vector.load %arg7[%c0_24, %c0_25] : memref<16x128xf32, #tpu.memory_space<vmem>>, vector<16x128xf32>
      tpu.vector_store %arg7[%c0_24, %c0_25], %35 {strides = array<i32>} : memref<16x128xf32, #tpu.memory_space<vmem>>, vector<16x128xf32>,
    } else {
    }
    return
  }
  func.func @transform_0(%arg0: i32, %arg1: i32) -> (i32, i32) {
    %c0_i32 = arith.constant 0 : i32
    %c0_i32_0 = arith.constant 0 : i32
    return %arg0, %c0_i32 : i32, i32
  }
  func.func @transform_1(%arg0: i32, %arg1: i32) -> (i32, i32, i32) {
    %c0_i32 = arith.constant 0 : i32
    %c0_i32_0 = arith.constant 0 : i32
    %c0_i32_1 = arith.constant 0 : i32
    return %arg1, %c0_i32, %c0_i32_0 : i32, i32, i32
  }
  func.func @transform_2(%arg0: i32, %arg1: i32) -> (i32, i32) {
    %c0_i32 = arith.constant 0 : i32
    %c0_i32_0 = arith.constant 0 : i32
    return %c0_i32, %arg1 : i32, i32
  }
  func.func @transform_3(%arg0: i32, %arg1: i32) -> (i32, i32) {
    %c0_i32 = arith.constant 0 : i32
    %c0_i32_0 = arith.constant 0 : i32
    return %arg1, %c0_i32 : i32, i32
  }
  func.func @transform_4(%arg0: i32, %arg1: i32) -> (i32, i32) {
    %c0_i32 = arith.constant 0 : i32
    %c0_i32_0 = arith.constant 0 : i32
    %c0_i32_1 = arith.constant 0 : i32
    return %c0_i32, %c0_i32_0 : i32, i32
  }
  func.func @transform_5(%arg0: i32, %arg1: i32) -> (i32, i32) {
    %c0_i32 = arith.constant 0 : i32
    %c0_i32_0 = arith.constant 0 : i32
    return %arg0, %c0_i32 : i32, i32
  }
}

</mosaic_0001>

<llo_original>
// kernel: _glu_forward_impl.1
$region0: #{_glu_forward_impl.1}
  #allocation0 [shape = 'u32[]', space=smem, size = 0x4, offset = 0x4, fixed_abs, tag = 'smem constant byte address 0x4 - core index']
  #allocation1 [shape = 'u32[144,128]{1,0:T(1,128)}', space=vmem, size = 0x12000, scoped, tag = 'internal scratch']
  #allocation2 [shape = 'f32[16,128]{1,0:T(8,128)}', space=vmem, size = 0x2000, scoped, tag = 'scratch operand']
  %s0 = inlined_call_operand.vmem [shape: f32[16,128], index: 0, kind: input, shape index: {}]
  %s1 = inlined_call_operand.vmem [shape: f32[2,128,256], index: 1, kind: input, shape index: {}]
  %s2 = inlined_call_operand.vmem [shape: f32[1,512], index: 2, kind: input, shape index: {}]
  %s3 = inlined_call_operand.vmem [shape: f32[512,128], index: 3, kind: input, shape index: {}]
  %s4 = inlined_call_operand.vmem [shape: f32[1,128], index: 4, kind: input, shape index: {}]
  %s5 = inlined_call_operand.hbm [shape: f32[16,128], index: 5, kind: output, shape index: {}]
  %s6 = sld [smem:[#allocation0]]
  $region61: #{_glu_forward_impl.1} parent=0
    _
  %s8 = ssub.s32 1, %s6
  %s9 = scalar_select 0, %s8, %s6
  $region1: #{_glu_forward_impl.1} parent=0
    #allocation3 [shape = 'u8[8192]{0}', space=vmem, size = 0x2000, scoped, tag = 'output window, operand 0, single buffered']
    #allocation4 [shape = 's32[2]{0}', space=sflag, size = 0x8, scoped, tag = 'scoped memory for _glu_forward_impl.1']
    %10 = vsyncpa [#allocation4], 0
    loop: start=0, step=1, limit=4
    $region2: #{_glu_forward_impl.1} parent=1 // loop_pre_header
      _
    $region3: #{_glu_forward_impl.1} parent=1 // loop_header
      %s12 = sphi 0, %s16
      %p13 = scmp.ge.s32.totalorder %s12, 4
      %s19 = sphi 0, %s31
      %s20 = sphi 0, %s27
      %s21 = sphi 0, %s19
      %s22 = sphi 0, %s20
      %s23 = sphi 0, %s21
      %s24 = sphi 0, %s22
      %s34 = sphi 0, %s36
      %s37 = sphi 0, %s34
      %s38 = sphi 0, %s37
      %s54 = sphi 0, %s38
      %s60 = sphi 0, %s62
      %s63 = sphi 0, %s60
      %s64 = sphi 0, %s63
      %s80 = sphi 0, %s64
      %s86 = sphi 0, %s88
      %s89 = sphi 0, %s86
      %s90 = sphi 0, %s89
      %s106 = sphi 0, %s90
      %s112 = sphi 0, %s114
      %s115 = sphi 0, %s112
      %s116 = sphi 0, %s115
      %s132 = sphi 0, %s116
      %s136 = sphi 0, %s136
      %s138 = sphi 0, %s136
      %s139 = sphi 0, %s138
      %s153 = sphi 0, %s139
      %s159 = sphi 0, %s161
      %s162 = sphi 0, %s159
      %s163 = sphi 0, %s162
      %s179 = sphi 0, %s163
    $region4: #{_glu_forward_impl.1} parent=1 // loop_header_branch
      %15 = sbr.rel (%p13) target = $region8
    $region5: #{_glu_forward_impl.1} parent=1 // loop_body
      %s17 = ssub.s32 %s12, 1
      %s18 = ssub.s32 %s12, 2
      %s25 = sadd.s32 1, %s20
      %p26 = scmp.ge.s32.totalorder %s25, 2
      %s27 = scalar_select %p26, 0, %s25
      %s28 = sadd.s32 1, %s19
      %s29 = scalar_select %p26, %s28, %s19
      %p30 = scmp.ge.s32.totalorder %s29, 1
      %s31 = scalar_select %p30, 0, %s29
      %s32 = ssub.s32 %s19, %s31
      %p33 = scmp.eq.s32.totalorder %s32, 0
      %s35 = sadd.s32 %s34, 1
      %s36 = scalar_select %p33, %s34, %s35
      %p39 = pneg %p33
      %p40 = scmp.eq.s32.totalorder %s12, 1
      %p41 = por %p39, %p40
      %p42 = scmp.ne.s32.totalorder %s34, %s37
      %p43 = scmp.eq.s32.totalorder %s12, 0
      %p44 = por %p42, %p43
      %p45 = scmp.ne.s32.totalorder %s34, %s37
      %p46 = scmp.eq.s32.totalorder %s17, 1
      %p47 = por %p45, %p46
      %p48 = scmp.ne.s32.totalorder %s37, %s38
      %p49 = scmp.eq.s32.totalorder %s17, 0
      %p50 = por %p48, %p49
      %p51 = scmp.ne.s32.totalorder %s37, %s38
      %p52 = scmp.eq.s32.totalorder %s18, 1
      %p53 = por %p51, %p52
      %p55 = scmp.ne.s32.totalorder %s38, %s54
      %p56 = scmp.eq.s32.totalorder %s18, 0
      %p57 = por %p55, %p56
      %s58 = ssub.s32 %s20, %s27
      %p59 = scmp.eq.s32.totalorder %s58, 0
      %s61 = sadd.s32 %s60, 1
      %s62 = scalar_select %p59, %s60, %s61
      %p65 = pneg %p59
      %p66 = scmp.eq.s32.totalorder %s12, 1
      %p67 = por %p65, %p66
      %p68 = scmp.ne.s32.totalorder %s60, %s63
      %p69 = scmp.eq.s32.totalorder %s12, 0
      %p70 = por %p68, %p69
      %p71 = scmp.ne.s32.totalorder %s60, %s63
      %p72 = scmp.eq.s32.totalorder %s17, 1
      %p73 = por %p71, %p72
      %p74 = scmp.ne.s32.totalorder %s63, %s64
      %p75 = scmp.eq.s32.totalorder %s17, 0
      %p76 = por %p74, %p75
      %p77 = scmp.ne.s32.totalorder %s63, %s64
      %p78 = scmp.eq.s32.totalorder %s18, 1
      %p79 = por %p77, %p78
      %p81 = scmp.ne.s32.totalorder %s64, %s80
      %p82 = scmp.eq.s32.totalorder %s18, 0
      %p83 = por %p81, %p82
      %s84 = ssub.s32 %s20, %s27
      %p85 = scmp.eq.s32.totalorder %s84, 0
      %s87 = sadd.s32 %s86, 1
      %s88 = scalar_select %p85, %s86, %s87
      %p91 = pneg %p85
      %p92 = scmp.eq.s32.totalorder %s12, 1
      %p93 = por %p91, %p92
      %p94 = scmp.ne.s32.totalorder %s86, %s89
      %p95 = scmp.eq.s32.totalorder %s12, 0
      %p96 = por %p94, %p95
      %p97 = scmp.ne.s32.totalorder %s86, %s89
      %p98 = scmp.eq.s32.totalorder %s17, 1
      %p99 = por %p97, %p98
      %p100 = scmp.ne.s32.totalorder %s89, %s90
      %p101 = scmp.eq.s32.totalorder %s17, 0
      %p102 = por %p100, %p101
      %p103 = scmp.ne.s32.totalorder %s89, %s90
      %p104 = scmp.eq.s32.totalorder %s18, 1
      %p105 = por %p103, %p104
      %p107 = scmp.ne.s32.totalorder %s90, %s106
      %p108 = scmp.eq.s32.totalorder %s18, 0
      %p109 = por %p107, %p108
      %s110 = ssub.s32 %s20, %s27
      %p111 = scmp.eq.s32.totalorder %s110, 0
      %s113 = sadd.s32 %s112, 1
      %s114 = scalar_select %p111, %s112, %s113
      %p117 = pneg %p111
      %p118 = scmp.eq.s32.totalorder %s12, 1
      %p119 = por %p117, %p118
      %p120 = scmp.ne.s32.totalorder %s112, %s115
      %p121 = scmp.eq.s32.totalorder %s12, 0
      %p122 = por %p120, %p121
      %p123 = scmp.ne.s32.totalorder %s112, %s115
      %p124 = scmp.eq.s32.totalorder %s17, 1
      %p125 = por %p123, %p124
      %p126 = scmp.ne.s32.totalorder %s115, %s116
      %p127 = scmp.eq.s32.totalorder %s17, 0
      %p128 = por %p126, %p127
      %p129 = scmp.ne.s32.totalorder %s115, %s116
      %p130 = scmp.eq.s32.totalorder %s18, 1
      %p131 = por %p129, %p130
      %p133 = scmp.ne.s32.totalorder %s116, %s132
      %p134 = scmp.eq.s32.totalorder %s18, 0
      %p135 = por %p133, %p134
      %s137 = sadd.s32 %s136, 1
      %p140 = scmp.eq.s32.totalorder %s12, 1
      %p141 = scmp.ne.s32.totalorder %s136, %s138
      %p142 = scmp.eq.s32.totalorder %s12, 0
      %p143 = por %p141, %p142
      %p144 = scmp.ne.s32.totalorder %s136, %s138
      %p145 = scmp.eq.s32.totalorder %s17, 1
      %p146 = por %p144, %p145
      %p147 = scmp.ne.s32.totalorder %s138, %s139
      %p148 = scmp.eq.s32.totalorder %s17, 0
      %p149 = por %p147, %p148
      %p150 = scmp.ne.s32.totalorder %s138, %s139
      %p151 = scmp.eq.s32.totalorder %s18, 1
      %p152 = por %p150, %p151
      %p154 = scmp.ne.s32.totalorder %s139, %s153
      %p155 = scmp.eq.s32.totalorder %s18, 0
      %p156 = por %p154, %p155
      %s157 = ssub.s32 %s19, %s31
      %p158 = scmp.eq.s32.totalorder %s157, 0
      %s160 = sadd.s32 %s159, 1
      %s161 = scalar_select %p158, %s159, %s160
      %p164 = pneg %p158
      %p165 = scmp.eq.s32.totalorder %s12, 1
      %p166 = por %p164, %p165
      %p167 = scmp.ne.s32.totalorder %s159, %s162
      %p168 = scmp.eq.s32.totalorder %s12, 0
      %p169 = por %p167, %p168
      %p170 = scmp.ne.s32.totalorder %s159, %s162
      %p171 = scmp.eq.s32.totalorder %s17, 1
      %p172 = por %p170, %p171
      %p173 = scmp.ne.s32.totalorder %s162, %s163
      %p174 = scmp.eq.s32.totalorder %s17, 0
      %p175 = por %p173, %p174
      %p176 = scmp.ne.s32.totalorder %s162, %s163
      %p177 = scmp.eq.s32.totalorder %s18, 1
      %p178 = por %p176, %p177
      %p180 = scmp.ne.s32.totalorder %s163, %s179
      %p181 = scmp.eq.s32.totalorder %s18, 0
      %p182 = por %p180, %p181
      %p183 = scmp.le.s32.totalorder 1, %s12
      %p184 = scmp.lt.s32.totalorder %s12, 3
      %p185 = pnand %p183, %p184
      %p186 = pneg %p185
      // Predicated region
      $region9: #{_glu_forward_impl.1} parent=5 // pred_check
        _
      $region10: #{_glu_forward_impl.1} parent=5 // pred_check_branch
        %188 = sbr.rel (%p185) target = $region12
      $region11: #{_glu_forward_impl.1} parent=5 // pred_region
        %s189 = ssub.s32 %s12, 1
        // Predicated region
        $region13: #{_glu_forward_impl.1} parent=11 // pred_check
          %p190 = pneg %p50
        $region14: #{_glu_forward_impl.1} parent=11 // pred_check_branch
          %192 = sbr.rel (%p190) target = $region16
        $region15: #{_glu_forward_impl.1} parent=11 // pred_region
          %s193 = smul.u32 2, %s21
          %p194 = scmp.lt.s32.totalorder %s193, 1
          %s195 = scalar_select %p194, %s193, 1
          %s196 = smul.addr %s195, 8
          %s197 = scalar_lea.vmem %s0, %s196
          %s198 = smul.u32 2, %s21
        $region16: #{_glu_forward_impl.1} parent=11 // pred_fallthru
          _
        // Predicated region
        $region17: #{_glu_forward_impl.1} parent=11 // pred_check
          %p199 = pneg %p149
        $region18: #{_glu_forward_impl.1} parent=11 // pred_check_branch
          %201 = sbr.rel (%p199) target = $region20
        $region19: #{_glu_forward_impl.1} parent=11 // pred_region
          _
        $region20: #{_glu_forward_impl.1} parent=11 // pred_fallthru
          _
      $region12: #{_glu_forward_impl.1} parent=5 // pred_fallthru
        _
      %p202 = scmp.lt.s32.totalorder %s12, 2
      // Predicated region
      $region21: #{_glu_forward_impl.1} parent=5 // pred_check
        %p203 = pneg %p202
      $region22: #{_glu_forward_impl.1} parent=5 // pred_check_branch
        %205 = sbr.rel (%p203) target = $region24
      $region23: #{_glu_forward_impl.1} parent=5 // pred_region
        // Predicated region
        $region25: #{_glu_forward_impl.1} parent=23 // pred_check
          %p206 = pneg %p70
        $region26: #{_glu_forward_impl.1} parent=23 // pred_check_branch
          %208 = sbr.rel (%p206) target = $region28
        $region27: #{_glu_forward_impl.1} parent=23 // pred_region
          %p209 = scmp.lt.s32.totalorder %s20, 1
          %s210 = scalar_select %p209, %s20, 1
          %s211 = smul.addr %s210, 32
          %s212 = smul.addr %s211, 8
          %s213 = scalar_lea.vmem %s1, %s212
        $region28: #{_glu_forward_impl.1} parent=23 // pred_fallthru
          _
        // Predicated region
        $region29: #{_glu_forward_impl.1} parent=23 // pred_check
          %p214 = pneg %p96
        $region30: #{_glu_forward_impl.1} parent=23 // pred_check_branch
          %216 = sbr.rel (%p214) target = $region32
        $region31: #{_glu_forward_impl.1} parent=23 // pred_region
          %s217 = smul.u32 2, %s20
          %p218 = scmp.lt.s32.totalorder %s217, 3
          %s219 = scalar_select %p218, %s217, 3
          %s220 = scalar_lea.vmem %s2, %s219
          %s221 = smul.u32 2, %s20
        $region32: #{_glu_forward_impl.1} parent=23 // pred_fallthru
          _
        // Predicated region
        $region33: #{_glu_forward_impl.1} parent=23 // pred_check
          %p222 = pneg %p122
        $region34: #{_glu_forward_impl.1} parent=23 // pred_check_branch
          %224 = sbr.rel (%p222) target = $region36
        $region35: #{_glu_forward_impl.1} parent=23 // pred_region
          %s225 = smul.u32 32, %s20
          %p226 = scmp.lt.s32.totalorder %s225, 63
          %s227 = scalar_select %p226, %s225, 63
          %s228 = smul.addr %s227, 8
          %s229 = scalar_lea.vmem %s3, %s228
          %s230 = smul.u32 32, %s20
        $region36: #{_glu_forward_impl.1} parent=23 // pred_fallthru
          _
      $region24: #{_glu_forward_impl.1} parent=5 // pred_fallthru
        _
      %p231 = scmp.le.s32.totalorder 1, %s12
      %p232 = scmp.lt.s32.totalorder %s12, 3
      %p233 = pnand %p231, %p232
      %p234 = pneg %p233
      // Predicated region
      $region37: #{_glu_forward_impl.1} parent=5 // pred_check
        _
      $region38: #{_glu_forward_impl.1} parent=5 // pred_check_branch
        %236 = sbr.rel (%p233) target = $region40
      $region39: #{_glu_forward_impl.1} parent=5 // pred_region
        %s237 = ssub.s32 %s12, 1
        %s238 = smul.u32 2, %s21
        %p239 = scmp.lt.s32.totalorder %s238, 1
        %s240 = scalar_select %p239, %s238, 1
        %s241 = smul.addr %s240, 8
        %s242 = scalar_lea.vmem %s0, %s241
        %p243 = pneg %p50
        %p244 = pneg %p47
        %p245 = scmp.lt.s32.totalorder %s22, 1
        %s246 = scalar_select %p245, %s22, 1
        %s247 = smul.addr %s246, 32
        %s248 = smul.addr %s247, 8
        %s249 = scalar_lea.vmem %s1, %s248
        %p250 = pneg %p76
        %p251 = pneg %p73
        %s252 = smul.u32 2, %s22
        %p253 = scmp.lt.s32.totalorder %s252, 3
        %s254 = scalar_select %p253, %s252, 3
        %s255 = scalar_lea.vmem %s2, %s254
        %p256 = pneg %p102
        %p257 = pneg %p99
        %s258 = smul.u32 32, %s22
        %p259 = scmp.lt.s32.totalorder %s258, 63
        %s260 = scalar_select %p259, %s258, 63
        %s261 = smul.addr %s260, 8
        %s262 = scalar_lea.vmem %s3, %s261
        %p263 = pneg %p128
        %p264 = pneg %p125
        %p265 = pneg %p149
        %p266 = pneg %p146
        %p267 = pneg %p175
        %p268 = pneg %p172
        %s269 = smul.u32 2, %s21
        %p270 = scmp.lt.s32.totalorder %s269, 1
        %s271 = scalar_select %p270, %s269, 1
        %s272 = smul.addr %s271, 8
        %s273 = scalar_lea.vmem %s0, %s272
        %s274 = smul.u32 2, %s21
        %p275 = scmp.lt.s32.totalorder %s22, 1
        %s276 = scalar_select %p275, %s22, 1
        %s277 = smul.addr %s276, 32
        %s278 = smul.addr %s277, 8
        %s279 = scalar_lea.vmem %s1, %s278
        %s280 = smul.u32 2, %s22
        %p281 = scmp.lt.s32.totalorder %s280, 3
        %s282 = scalar_select %p281, %s280, 3
        %s283 = scalar_lea.vmem %s2, %s282
        %s284 = smul.u32 2, %s22
        %s285 = smul.u32 32, %s22
        %p286 = scmp.lt.s32.totalorder %s285, 63
        %s287 = scalar_select %p286, %s285, 63
        %s288 = smul.addr %s287, 8
        %s289 = scalar_lea.vmem %s3, %s288
        %s290 = smul.u32 32, %s22
        %s291 = smul.u32 2, %s21
        %p292 = scmp.eq.s32.totalorder %s22, 0
        // Predicated region
        $region41: #{_glu_forward_impl.1} parent=39 // pred_check
          %p293 = pneg %p292
        $region42: #{_glu_forward_impl.1} parent=39 // pred_check_branch
          %295 = sbr.rel (%p293) target = $region44
        $region43: #{_glu_forward_impl.1} parent=39 // pred_region
          %296 = vst [vmem:[#allocation2] sm:$0xff] 0.0
          %297 = vst [vmem:[#allocation2 + $0x8] sm:$0xff] 0.0
        $region44: #{_glu_forward_impl.1} parent=39 // pred_fallthru
          _
        %v298 = vld [vmem:[%s273] sm:$0xff]
        %v299 = vld [vmem:[%s273 + $0x8] sm:$0xff]
        %v300 = vld [vmem:[%s279] sm:$0xff]
        %v301 = vld [vmem:[%s279 + $0x8] sm:$0xff]
        %v302 = vld [vmem:[%s279 + $0x10] sm:$0xff]
        %v303 = vld [vmem:[%s279 + $0x18] sm:$0xff]
        %v304 = vld [vmem:[%s279 + $0x20] sm:$0xff]
        %v305 = vld [vmem:[%s279 + $0x28] sm:$0xff]
        %v306 = vld [vmem:[%s279 + $0x30] sm:$0xff]
        %v307 = vld [vmem:[%s279 + $0x38] sm:$0xff]
        %v308 = vld [vmem:[%s279 + $0x40] sm:$0xff]
        %v309 = vld [vmem:[%s279 + $0x48] sm:$0xff]
        %v310 = vld [vmem:[%s279 + $0x50] sm:$0xff]
        %v311 = vld [vmem:[%s279 + $0x58] sm:$0xff]
        %v312 = vld [vmem:[%s279 + $0x60] sm:$0xff]
        %v313 = vld [vmem:[%s279 + $0x68] sm:$0xff]
        %v314 = vld [vmem:[%s279 + $0x70] sm:$0xff]
        %v315 = vld [vmem:[%s279 + $0x78] sm:$0xff]
        %v316 = vld [vmem:[%s279 + $0x80] sm:$0xff]
        %v317 = vld [vmem:[%s279 + $0x88] sm:$0xff]
        %v318 = vld [vmem:[%s279 + $0x90] sm:$0xff]
        %v319 = vld [vmem:[%s279 + $0x98] sm:$0xff]
        %v320 = vld [vmem:[%s279 + $0xa0] sm:$0xff]
        %v321 = vld [vmem:[%s279 + $0xa8] sm:$0xff]
        %v322 = vld [vmem:[%s279 + $0xb0] sm:$0xff]
        %v323 = vld [vmem:[%s279 + $0xb8] sm:$0xff]
        %v324 = vld [vmem:[%s279 + $0xc0] sm:$0xff]
        %v325 = vld [vmem:[%s279 + $0xc8] sm:$0xff]
        %v326 = vld [vmem:[%s279 + $0xd0] sm:$0xff]
        %v327 = vld [vmem:[%s279 + $0xd8] sm:$0xff]
        %v328 = vld [vmem:[%s279 + $0xe0] sm:$0xff]
        %v329 = vld [vmem:[%s279 + $0xe8] sm:$0xff]
        %v330 = vld [vmem:[%s279 + $0xf0] sm:$0xff]
        %v331 = vld [vmem:[%s279 + $0xf8] sm:$0xff]
        %v332 = vld [vmem:[%s283] sm:$0x3]
        %v334 = vlaneseq
        %v335 = vshrl.u32 %v334, 7
        %v336 = vsub.s32 0, %v335
        %v337 = vrot.slane %v332, %v336
        %v338 = vlaneseq
        %v339 = vshrl.u32 %v338, 7
        %v340 = vsub.s32 1, %v339
        %v341 = vrot.slane %v332, %v340
        %344 = vmatprep.subr.mxu0 %v331
        %345 = vmatpush1.msra.mxu0 %v330
        %346 = vmatprep.subr.mxu0 %v329
        %347 = vmatpush1.msra.mxu0 %v328
        %348 = vmatprep.subr.mxu0 %v327
        %349 = vmatpush1.msra.mxu0 %v326
        %350 = vmatprep.subr.mxu0 %v325
        %351 = vmatpush1.msra.mxu0 %v324
        %352 = vmatprep.subr.mxu0 %v323
        %353 = vmatpush1.msra.mxu0 %v322
        %354 = vmatprep.subr.mxu0 %v321
        %355 = vmatpush1.msra.mxu0 %v320
        %356 = vmatprep.subr.mxu0 %v319
        %357 = vmatpush1.msra.mxu0 %v318
        %358 = vmatprep.subr.mxu0 %v317
        %359 = vmatpush1.msra.mxu0 %v316
        %360 = vmatprep.subr.mxu0 %v315
        %361 = vmatpush1.msra.mxu0 %v314
        %362 = vmatprep.subr.mxu0 %v313
        %363 = vmatpush1.msra.mxu0 %v312
        %364 = vmatprep.subr.mxu0 %v311
        %365 = vmatpush1.msra.mxu0 %v310
        %366 = vmatprep.subr.mxu0 %v309
        %367 = vmatpush1.msra.mxu0 %v308
        %368 = vmatprep.subr.mxu0 %v307
        %369 = vmatpush1.msra.mxu0 %v306
        %370 = vmatprep.subr.mxu0 %v305
        %371 = vmatpush1.msra.mxu0 %v304
        %372 = vmatprep.subr.mxu0 %v303
        %373 = vmatpush1.msra.mxu0 %v302
        %374 = vmatprep.subr.mxu0 %v301
        %375 = vmatpush1.msra.mxu0 %v300
        %376 = vmatprep.subr.mxu0 0.0
        %377 = vmatpush2.msra.mxu0 0.0
        %378 = vmatprep.subr.mxu0 0.0
        %379 = vmatpush2.msra.mxu0 0.0
        %380 = vmatprep.subr.mxu0 0.0
        %381 = vmatpush2.msra.mxu0 0.0
        %382 = vmatprep.subr.mxu0 0.0
        %383 = vmatpush2.msra.mxu0 0.0
        %384 = vmatprep.subr.mxu0 0.0
        %385 = vmatpush2.msra.mxu0 0.0
        %386 = vmatprep.subr.mxu0 0.0
        %387 = vmatpush2.msra.mxu0 0.0
        %388 = vmatprep.subr.mxu0 0.0
        %389 = vmatpush2.msra.mxu0 0.0
        %390 = vmatprep.subr.mxu0 0.0
        %391 = vmatpush2.msra.mxu0 0.0
        %392 = vmatprep.subr.mxu0 0.0
        %393 = vmatpush2.msra.mxu0 0.0
        %394 = vmatprep.subr.mxu0 0.0
        %395 = vmatpush2.msra.mxu0 0.0
        %396 = vmatprep.subr.mxu0 0.0
        %397 = vmatpush2.msra.mxu0 0.0
        %398 = vmatprep.subr.mxu0 0.0
        %399 = vmatpush2.msra.mxu0 0.0
        %400 = vmatprep.subr.mxu0 0.0
        %401 = vmatpush2.msra.mxu0 0.0
        %402 = vmatprep.subr.mxu0 0.0
        %403 = vmatpush2.msra.mxu0 0.0
        %404 = vmatprep.subr.mxu0 0.0
        %405 = vmatpush2.msra.mxu0 0.0
        %406 = vmatprep.subr.mxu0 0.0
        %407 = vmatpush2.msra.mxu0 0.0
        %408 = vmatprep.mubr.f32.mxu0 0.0
        %409 = vmatmul.mubr.f32.gmra.mxu0 %v298
        %v410 = vpop.f32.mrf.mxu0
        %v411 = vadd.f32 %v337, %v410
        %v412 = vpop.f32.mrf.mxu0
        %v413 = vadd.f32 %v341, %v412
        %414 = vmatprep.mubr.f32.mxu0 0.0
        %415 = vmatmul.mubr.f32.gmra.mxu0 %v299
        %v416 = vpop.f32.mrf.mxu0
        %v417 = vadd.f32 %v337, %v416
        %v418 = vpop.f32.mrf.mxu0
        %v419 = vadd.f32 %v341, %v418
        %420 = vdwg.mxu0
        %v421 = vmul.f32 %v411, 0.5
        %v422 = vmul.f32 %v413, 0.5
        %v423 = vmul.f32 %v417, 0.5
        %v424 = vmul.f32 %v419, 0.5
        %v425 = vmul.f32 %v411, 0.7978846
        %v426 = vmul.f32 %v413, 0.7978846
        %v427 = vmul.f32 %v417, 0.7978846
        %v428 = vmul.f32 %v419, 0.7978846
        %v429 = vmul.f32 %v411, 0.044715
        %v430 = vmul.f32 %v413, 0.044715
        %v431 = vmul.f32 %v417, 0.044715
        %v432 = vmul.f32 %v419, 0.044715
        %v433 = vmul.f32 %v429, %v411
        %v434 = vmul.f32 %v430, %v413
        %v435 = vmul.f32 %v431, %v417
        %v436 = vmul.f32 %v432, %v419
        %v437 = vadd.f32 %v433, 1.0
        %v438 = vadd.f32 %v434, 1.0
        %v439 = vadd.f32 %v435, 1.0
        %v440 = vadd.f32 %v436, 1.0
        %v441 = vmul.f32 %v425, %v437
        %v442 = vmul.f32 %v426, %v438
        %v443 = vmul.f32 %v427, %v439
        %v444 = vmul.f32 %v428, %v440
        %v445 = vtanh.pop %v441
        %v446 = vtanh.pop %v442
        %v447 = vtanh.pop %v443
        %v448 = vtanh.pop %v444
        %v449 = vadd.f32 %v445, 1.0
        %v450 = vadd.f32 %v446, 1.0
        %v451 = vadd.f32 %v447, 1.0
        %v452 = vadd.f32 %v448, 1.0
        %v453 = vmul.f32 %v421, %v449
        %v454 = vmul.f32 %v422, %v450
        %v455 = vmul.f32 %v423, %v451
        %v456 = vmul.f32 %v424, %v452
        %v457 = vld [vmem:[#allocation2] sm:$0xff]
        %v458 = vld [vmem:[#allocation2 + $0x8] sm:$0xff]
        %v459 = vld [vmem:[%s289] sm:$0xff]
        %v460 = vld [vmem:[%s289 + $0x8] sm:$0xff]
        %v461 = vld [vmem:[%s289 + $0x10] sm:$0xff]
        %v462 = vld [vmem:[%s289 + $0x18] sm:$0xff]
        %v463 = vld [vmem:[%s289 + $0x20] sm:$0xff]
        %v464 = vld [vmem:[%s289 + $0x28] sm:$0xff]
        %v465 = vld [vmem:[%s289 + $0x30] sm:$0xff]
        %v466 = vld [vmem:[%s289 + $0x38] sm:$0xff]
        %v467 = vld [vmem:[%s289 + $0x40] sm:$0xff]
        %v468 = vld [vmem:[%s289 + $0x48] sm:$0xff]
        %v469 = vld [vmem:[%s289 + $0x50] sm:$0xff]
        %v470 = vld [vmem:[%s289 + $0x58] sm:$0xff]
        %v471 = vld [vmem:[%s289 + $0x60] sm:$0xff]
        %v472 = vld [vmem:[%s289 + $0x68] sm:$0xff]
        %v473 = vld [vmem:[%s289 + $0x70] sm:$0xff]
        %v474 = vld [vmem:[%s289 + $0x78] sm:$0xff]
        %v475 = vld [vmem:[%s289 + $0x80] sm:$0xff]
        %v476 = vld [vmem:[%s289 + $0x88] sm:$0xff]
        %v477 = vld [vmem:[%s289 + $0x90] sm:$0xff]
        %v478 = vld [vmem:[%s289 + $0x98] sm:$0xff]
        %v479 = vld [vmem:[%s289 + $0xa0] sm:$0xff]
        %v480 = vld [vmem:[%s289 + $0xa8] sm:$0xff]
        %v481 = vld [vmem:[%s289 + $0xb0] sm:$0xff]
        %v482 = vld [vmem:[%s289 + $0xb8] sm:$0xff]
        %v483 = vld [vmem:[%s289 + $0xc0] sm:$0xff]
        %v484 = vld [vmem:[%s289 + $0xc8] sm:$0xff]
        %v485 = vld [vmem:[%s289 + $0xd0] sm:$0xff]
        %v486 = vld [vmem:[%s289 + $0xd8] sm:$0xff]
        %v487 = vld [vmem:[%s289 + $0xe0] sm:$0xff]
        %v488 = vld [vmem:[%s289 + $0xe8] sm:$0xff]
        %v489 = vld [vmem:[%s289 + $0xf0] sm:$0xff]
        %v490 = vld [vmem:[%s289 + $0xf8] sm:$0xff]
        %491 = vmatprep.subr.mxu0 0.0
        %492 = vmatpush1.msra.mxu0 %v474
        %493 = vmatprep.subr.mxu0 0.0
        %494 = vmatpush1.msra.mxu0 %v473
        %495 = vmatprep.subr.mxu0 0.0
        %496 = vmatpush1.msra.mxu0 %v472
        %497 = vmatprep.subr.mxu0 0.0
        %498 = vmatpush1.msra.mxu0 %v471
        %499 = vmatprep.subr.mxu0 0.0
        %500 = vmatpush1.msra.mxu0 %v470
        %501 = vmatprep.subr.mxu0 0.0
        %502 = vmatpush1.msra.mxu0 %v469
        %503 = vmatprep.subr.mxu0 0.0
        %504 = vmatpush1.msra.mxu0 %v468
        %505 = vmatprep.subr.mxu0 0.0
        %506 = vmatpush1.msra.mxu0 %v467
        %507 = vmatprep.subr.mxu0 0.0
        %508 = vmatpush1.msra.mxu0 %v466
        %509 = vmatprep.subr.mxu0 0.0
        %510 = vmatpush1.msra.mxu0 %v465
        %511 = vmatprep.subr.mxu0 0.0
        %512 = vmatpush1.msra.mxu0 %v464
        %513 = vmatprep.subr.mxu0 0.0
        %514 = vmatpush1.msra.mxu0 %v463
        %515 = vmatprep.subr.mxu0 0.0
        %516 = vmatpush1.msra.mxu0 %v462
        %517 = vmatprep.subr.mxu0 0.0
        %518 = vmatpush1.msra.mxu0 %v461
        %519 = vmatprep.subr.mxu0 0.0
        %520 = vmatpush1.msra.mxu0 %v460
        %521 = vmatprep.subr.mxu0 0.0
        %522 = vmatpush1.msra.mxu0 %v459
        %523 = vmatprep.subr.mxu0 0.0
        %524 = vmatpush2.msra.mxu0 %v490
        %525 = vmatprep.subr.mxu0 0.0
        %526 = vmatpush2.msra.mxu0 %v489
        %527 = vmatprep.subr.mxu0 0.0
        %528 = vmatpush2.msra.mxu0 %v488
        %529 = vmatprep.subr.mxu0 0.0
        %530 = vmatpush2.msra.mxu0 %v487
        %531 = vmatprep.subr.mxu0 0.0
        %532 = vmatpush2.msra.mxu0 %v486
        %533 = vmatprep.subr.mxu0 0.0
        %534 = vmatpush2.msra.mxu0 %v485
        %535 = vmatprep.subr.mxu0 0.0
        %536 = vmatpush2.msra.mxu0 %v484
        %537 = vmatprep.subr.mxu0 0.0
        %538 = vmatpush2.msra.mxu0 %v483
        %539 = vmatprep.subr.mxu0 0.0
        %540 = vmatpush2.msra.mxu0 %v482
        %541 = vmatprep.subr.mxu0 0.0
        %542 = vmatpush2.msra.mxu0 %v481
        %543 = vmatprep.subr.mxu0 0.0
        %544 = vmatpush2.msra.mxu0 %v480
        %545 = vmatprep.subr.mxu0 0.0
        %546 = vmatpush2.msra.mxu0 %v479
        %547 = vmatprep.subr.mxu0 0.0
        %548 = vmatpush2.msra.mxu0 %v478
        %549 = vmatprep.subr.mxu0 0.0
        %550 = vmatpush2.msra.mxu0 %v477
        %551 = vmatprep.subr.mxu0 0.0
        %552 = vmatpush2.msra.mxu0 %v476
        %553 = vmatprep.subr.mxu0 0.0
        %554 = vmatpush2.msra.mxu0 %v475
        %555 = vmatprep.mubr.f32.mxu0 %v454
        %556 = vmatmul.mubr.f32.gmra.mxu0 %v453
        %v557 = vpop.f32.mrf.mxu0
        %v558 = vadd.f32 0.0, %v557
        %v559 = vpop.f32.mrf.mxu0
        %560 = vmatprep.mubr.f32.mxu0 %v456
        %561 = vmatmul.mubr.f32.gmra.mxu0 %v455
        %v562 = vpop.f32.mrf.mxu0
        %v563 = vadd.f32 0.0, %v562
        %v564 = vpop.f32.mrf.mxu0
        %565 = vdwg.mxu0
        %v566 = vadd.f32 %v457, %v558
        %v567 = vadd.f32 %v458, %v563
        %568 = vst [vmem:[#allocation2] sm:$0xff] %v566
        %569 = vst [vmem:[#allocation2 + $0x8] sm:$0xff] %v567
        %p570 = scmp.eq.s32.totalorder %s22, 1
        // Predicated region
        $region45: #{_glu_forward_impl.1} parent=39 // pred_check
          %p571 = pneg %p570
        $region46: #{_glu_forward_impl.1} parent=39 // pred_check_branch
          %573 = sbr.rel (%p571) target = $region48
        $region47: #{_glu_forward_impl.1} parent=39 // pred_region
          %v574 = vld [vmem:[#allocation2] sm:$0xff]
          %v575 = vld [vmem:[#allocation2 + $0x8] sm:$0xff]
          %v576 = vld [vmem:[%s4] sm:$0x1]
          %v578 = vlaneseq
          %v579 = vshrl.u32 %v578, 7
          %v580 = vsub.s32 0, %v579
          %v581 = vrot.slane %v576, %v580
          %v583 = vadd.f32 %v574, %v581
          %v584 = vadd.f32 %v575, %v581
          %585 = vst [vmem:[#allocation3] sm:$0xff] %v583
          %586 = vst [vmem:[#allocation3 + $0x8] sm:$0xff] %v584
        $region48: #{_glu_forward_impl.1} parent=39 // pred_fallthru
          _
        // Predicated region
        $region49: #{_glu_forward_impl.1} parent=39 // pred_check
          %p587 = pneg %p172
        $region50: #{_glu_forward_impl.1} parent=39 // pred_check_branch
          %589 = sbr.rel (%p587) target = $region52
        $region51: #{_glu_forward_impl.1} parent=39 // pred_region
          %s590 = smul.u32 2, %s21
          %s592 = ssub.s32 256, 256
          %593 = vsyncadd [#allocation4], %s592
          %s594 = smul.addr %s590, 128
          %s595 = scalar_lea.hbm %s5, %s594
          %s596 = sshll.u32 [#allocation3], 4
          %s597 = int_to_ptr.vmem [resolvable:$true] %s596
          %602 = dma.vmem_to_hbm [thread:$0]  %s597, 256, %s595, [#allocation4], 128, 128, 8
        $region52: #{_glu_forward_impl.1} parent=39 // pred_fallthru
          _
        // Predicated region
        $region53: #{_glu_forward_impl.1} parent=39 // pred_check
          %p603 = pneg %p172
        $region54: #{_glu_forward_impl.1} parent=39 // pred_check_branch
          %605 = sbr.rel (%p603) target = $region56
        $region55: #{_glu_forward_impl.1} parent=39 // pred_region
          %606 = dma.done [#allocation4], 256
        $region56: #{_glu_forward_impl.1} parent=39 // pred_fallthru
          _
      $region40: #{_glu_forward_impl.1} parent=5 // pred_fallthru
        _
      %p607 = scmp.le.s32.totalorder 2, %s12
      // Predicated region
      $region57: #{_glu_forward_impl.1} parent=5 // pred_check
        %p608 = pneg %p607
      $region58: #{_glu_forward_impl.1} parent=5 // pred_check_branch
        %610 = sbr.rel (%p608) target = $region60
      $region59: #{_glu_forward_impl.1} parent=5 // pred_region
        %s611 = ssub.s32 %s12, 2
      $region60: #{_glu_forward_impl.1} parent=5 // pred_fallthru
        _
    $region6: #{_glu_forward_impl.1} parent=1 // loop_footer
      %s16 = sadd.s32 1, %s12
    $region7: #{_glu_forward_impl.1} parent=1 // loop_footer_branch
      %11 = sbr.rel target = $region3
    $region8: #{_glu_forward_impl.1} parent=1 // loop_exit
      _
    %612 = vsyncpa [#allocation4], 1
    %s613 = scalar_lea.sflag [#allocation4], 1
    %614 = vsyncpa %s613, 1

</llo_original>
